<compile_context>
chip_gen: v7x
topology: tpu7x:2x2x1
jax: 0.10.0
libtpu: 0.0.40
codegen_flags: <defaults>
</compile_context>

<pallas_src>
import functools

import jax
import jax.numpy as jnp
from jax.experimental import pallas as pl
from jax.experimental.pallas import tpu as pltpu

_LANE = 128
_SUBLANE = 8


# --------------------------------------------------------------------------- #
# Generation-dependent sizing
# --------------------------------------------------------------------------- #
@functools.lru_cache(maxsize=1)
def _chip_params():
    """Conservative defaults; only v7x opts into the 2-core split."""
    kind = ""
    try:
        kind = jax.devices()[0].device_kind.lower().replace(" ", "")
    except Exception:
        pass
    if "v7" in kind or "tpu7" in kind:
        # v7x: 2 TCs/chip, 64 MiB VMEM per TC, 3.2 TB/s HBM.
        return {"num_split": 2, "core_parallel": True,
                "target_tile_bytes": 8 << 20, "vmem_cap": 48 << 20}
    # v5e / v6e: 1 TC, 128 MiB VMEM.
    return {"num_split": 1, "core_parallel": False,
            "target_tile_bytes": 16 << 20, "vmem_cap": 96 << 20}


# --------------------------------------------------------------------------- #
# Kernel helpers
# --------------------------------------------------------------------------- #
def _acc_rows(tb, w):
    """Rows of the VMEM accumulator (mirrors _row_partial's static choice)."""
    return _SUBLANE if (tb % _SUBLANE == 0 and w % _LANE == 0) else 1


def _row_partial(sq):
    """Reduce a (tb, w) tile along rows with VPU-only work in the hot loop."""
    tb, w = sq.shape
    if _acc_rows(tb, w) == _SUBLANE:
        # Free sublane-split reshape -> vreg-wise adds, no cross-lane reduce.
        return jnp.sum(sq.reshape(tb // _SUBLANE, _SUBLANE, w), axis=0)
    return jnp.sum(sq, axis=0, keepdims=True)


def _neg_step(neg_ref, acc_ref, *, rows_total):
    """Accumulate sum(neg^2) partials for the current tile into acc_ref."""
    c = pl.program_id(0)
    i = pl.program_id(1)
    nsteps = pl.num_programs(1)
    tb = neg_ref.shape[0]

    @pl.when(i == 0)
    def _init():
        acc_ref[...] = jnp.zeros_like(acc_ref)

    row0 = (c * nsteps + i) * tb
    is_full = row0 + tb <= rows_total

    @pl.when(is_full)
    def _fast():                                   # interior tiles: no masking
        n = neg_ref[...].astype(jnp.float32)
        acc_ref[...] += _row_partial(n * n)

    @pl.when(jnp.logical_not(is_full))
    def _ragged():                                 # tail / duplicated clamped tiles
        n = neg_ref[...].astype(jnp.float32)
        sq = n * n
        row_ids = row0 + jax.lax.broadcasted_iota(jnp.int32, sq.shape, 0)
        sq = jnp.where(row_ids < rows_total, sq, 0.0)
        acc_ref[...] += _row_partial(sq)


def _make_kernel(*, inv_div, rows_total, single_split, with_semi):
    def kernel(*refs):
        if with_semi:
            pos_ref, conf_ref, semi_ref, sconf_ref, neg_ref, part_ref, acc_ref = refs
        else:
            pos_ref, conf_ref, neg_ref, part_ref, acc_ref = refs

        _neg_step(neg_ref, acc_ref, rows_total=rows_total)

        c = pl.program_id(0)
        i = pl.program_id(1)

        def _extra_loss():
            # loss_1 on zero-padded lane-dense slabs (padding contributes 0).
            d = pos_ref[...].astype(jnp.float32) - conf_ref[...].astype(jnp.float32)
            extra = jnp.sum(d * d)
            if with_semi:
                ds = semi_ref[...].astype(jnp.float32) - sconf_ref[...].astype(jnp.float32)
                extra = extra + jnp.sum(ds * ds) * inv_div
            return extra

        @pl.when(i == pl.num_programs(1) - 1)
        def _fin():
            # Single cross-lane reduce per grid split.
            neg_part = jnp.sum(acc_ref[...]) * inv_div
            if single_split:
                part_ref[...] = jnp.broadcast_to(neg_part + _extra_loss(), part_ref.shape)
            else:
                @pl.when(c == 0)
                def _with_pos():
                    part_ref[...] = jnp.broadcast_to(neg_part + _extra_loss(),
                                                     part_ref.shape)

                @pl.when(c != 0)
                def _neg_only():
                    part_ref[...] = jnp.broadcast_to(neg_part, part_ref.shape)

    return kernel


# --------------------------------------------------------------------------- #
# Wrapper
# --------------------------------------------------------------------------- #
def _round_up(x, m):
    return (x + m - 1) // m * m


def _lane_dense(vec):
    """1-D vector -> zero-padded (rows, 128) lane-dense layout (layout only)."""
    n = vec.shape[0]
    rows = max(1, _round_up(n, _LANE) // _LANE)
    pad = rows * _LANE - n
    if pad:
        vec = jnp.pad(vec, (0, pad))
    return vec.reshape(rows, _LANE)


def _choose_row_tile(rows, w, itemsize, target_bytes):
    """Row tile: ~target_bytes, multiple of 8, never larger than the array."""
    per_row = max(1, w * itemsize)
    t = (target_bytes // per_row) // _SUBLANE * _SUBLANE
    t = max(_SUBLANE, t)
    if t >= rows:
        return int(rows)          # single full-extent tile (any row count ok)
    return int(t)                 # multiple of 8; last tile may be ragged


def passleaf_loss(pos_score, neg_score, pos_sample,
                  semi_score=None, semi_sample=None, num_neg=None,
                  tile_bytes=None):
    """JAX/Pallas equivalent of PASSLEAF_Loss.forward (returns a scalar)."""
    chip = _chip_params()
    target_tile_bytes = chip["target_tile_bytes"] if tile_bytes is None else tile_bytes

    # Lane-dense prep (confidence column extraction + reshape only).
    pos_ld = _lane_dense(pos_score.reshape(-1))
    conf_ld = _lane_dense(pos_sample[:, 3])

    b, n_cols = neg_score.shape
    total = b * n_cols
    if total % _LANE == 0:
        # Free bitcast to a lane-dense slab; tile size decoupled from N.
        neg2d = neg_score.reshape(total // _LANE, _LANE)
    else:
        # Fallback: full-width rows (block last dim == full array dim).
        neg2d = neg_score
    rows, w = neg2d.shape
    itemsize = jnp.dtype(neg2d.dtype).itemsize

    tb = _choose_row_tile(rows, w, itemsize, target_tile_bytes)
    n_tiles = pl.cdiv(rows, tb)
    num_split = min(chip["num_split"], n_tiles)
    tiles_per_core = pl.cdiv(n_tiles, num_split)
    grid = (num_split, tiles_per_core)

    def _neg_idx(c, i):
        # Clamp so duplicated trailing tiles of the split stay in bounds;
        # their contribution is masked to zero inside the kernel.
        return (jnp.minimum(c * tiles_per_core + i, n_tiles - 1), 0)

    neg_spec = pl.BlockSpec((tb, w), _neg_idx)
    pos_spec = pl.BlockSpec(pos_ld.shape, lambda c, i: (0, 0))
    conf_spec = pl.BlockSpec(conf_ld.shape, lambda c, i: (0, 0))
    out_spec = pl.BlockSpec((_SUBLANE, _LANE), lambda c, i: (c, 0))
    out_shape = jax.ShapeDtypeStruct((num_split * _SUBLANE, _LANE), jnp.float32)

    with_semi = semi_score is not None
    if not with_semi:
        inv_div = 1.0 / float(n_cols)
        inputs = [pos_ld, conf_ld, neg2d]
        in_specs = [pos_spec, conf_spec, neg_spec]
        semi_elems = 0
    else:
        assert num_neg is not None, "num_neg (args.num_neg) required for the semi path"
        inv_div = 1.0 / float(num_neg)
        semi_ld = _lane_dense(semi_score.reshape(-1))
        sconf_ld = _lane_dense(semi_sample[:, 3])
        inputs = [pos_ld, conf_ld, semi_ld, sconf_ld, neg2d]
        in_specs = [pos_spec, conf_spec,
                    pl.BlockSpec(semi_ld.shape, lambda c, i: (0, 0)),
                    pl.BlockSpec(sconf_ld.shape, lambda c, i: (0, 0)),
                    neg_spec]
        semi_elems = int(semi_ld.size)

    kern = _make_kernel(inv_div=inv_div, rows_total=rows,
                        single_split=(num_split == 1), with_semi=with_semi)

    # VMEM budget: double-buffered neg tile + f32 intermediates (square /
    # iota / select on the masked path) + resident slabs + headroom, capped
    # below physical VMEM per generation.
    tile_in = tb * w * itemsize
    tile_f32 = tb * w * 4
    small = sum(int(x.size) * jnp.dtype(x.dtype).itemsize
                for x in inputs if x is not neg2d)
    vmem_limit = 2 * tile_in + 3 * tile_f32 + 2 * small + (6 << 20)
    vmem_limit = int(min(chip["vmem_cap"], max(24 << 20, vmem_limit)))

    if chip["core_parallel"] and num_split > 1:
        # Actually shards the leading axis across the two v7x TensorCores.
        dim_sem = (pltpu.CORE_PARALLEL, pltpu.ARBITRARY)
    else:
        dim_sem = ("arbitrary", "arbitrary")

    bytes_accessed = sum(int(x.size) * jnp.dtype(x.dtype).itemsize for x in inputs)
    bytes_accessed += num_split * _SUBLANE * _LANE * 4
    flops = 2 * int(neg_score.size) + 3 * int(pos_ld.size) + 3 * semi_elems

    parts = pl.pallas_call(
        kern,
        out_shape=out_shape,
        grid=grid,
        in_specs=in_specs,
        out_specs=out_spec,
        scratch_shapes=[pltpu.VMEM((_acc_rows(tb, w), w), jnp.float32)],
        compiler_params=pltpu.CompilerParams(
            dimension_semantics=dim_sem,
            vmem_limit_bytes=vmem_limit),
        cost_estimate=pl.CostEstimate(flops=flops, transcendentals=0,
                                      bytes_accessed=bytes_accessed),
    )(*inputs)

    # One partial per grid split (each written broadcast over its (8,128) block).
    return jnp.sum(parts[::_SUBLANE, 0])


# --------------------------------------------------------------------------- #
# Reference + demo
# --------------------------------------------------------------------------- #
def _reference(pos_score, neg_score, pos_sample, semi_score=None,
               semi_sample=None, num_neg=None):
    confidence = pos_sample[:, 3]
    ps = jnp.squeeze(pos_score)
    loss1 = jnp.sum((ps - confidence) ** 2)
    loss2 = jnp.sum(neg_score ** 2)
    if semi_score is not None:
        ss = jnp.squeeze(semi_score)
        conf_semi = semi_sample[:, 3]
        loss3 = jnp.sum((ss - conf_semi) ** 2)
        return loss1 + (loss2 + loss3) / num_neg
    return loss1 + loss2 / neg_score.shape[1]


def _make_inputs(key, b, n, bs):
    k1, k2, k3, k4, k5 = jax.random.split(key, 5)
    pos_score = jax.random.normal(k1, (b, 1), dtype=jnp.float32)
    neg_score = jax.random.normal(k2, (b, n), dtype=jnp.float32)
    pos_sample = jnp.concatenate(
        [jax.random.randint(k3, (b, 3), 0, 100).astype(jnp.float32),
         jax.random.uniform(k3, (b, 1), dtype=jnp.float32)], axis=1)
    semi_score = jax.random.normal(k4, (bs, 1), dtype=jnp.float32)
    semi_sample = jnp.concatenate(
        [jax.random.randint(k5, (bs, 3), 0, 100).astype(jnp.float32),
         jax.random.uniform(k5, (bs, 1), dtype=jnp.float32)], axis=1)
    return pos_score, neg_score, pos_sample, semi_score, semi_sample


if __name__ == "__main__":
    key = jax.random.PRNGKey(0)
    kA, kB, kC = jax.random.split(key, 3)

    # --- test 1/2: lane-aligned slab path (B*N % 128 == 0), no-semi & semi ---
    B, N, Bs = 8, 128, 8
    ps, ns, psamp, ss, ssamp = _make_inputs(kA, B, N, Bs)

    out1 = passleaf_loss(ps, ns, psamp)
    jax.block_until_ready(out1)
    ref1 = _reference(ps, ns, psamp)
    assert jnp.allclose(out1, ref1, rtol=1e-5, atol=1e-4), (out1, ref1)

    out2 = passleaf_loss(ps, ns, psamp, semi_score=ss, semi_sample=ssamp, num_neg=N)
    jax.block_until_ready(out2)
    ref2 = _reference(ps, ns, psamp, semi_score=ss, semi_sample=ssamp, num_neg=N)
    assert jnp.allclose(out2, ref2, rtol=1e-5, atol=1e-4), (out2, ref2)

    # --- test 3: unaligned fallback path (B*N % 128 != 0), multi-tile + ragged
    #     (tiny tile_bytes forces several grid steps at small shapes) ---
    ps3, ns3, psamp3, _, _ = _make_inputs(kB, 20, 96, 4)
    out3 = passleaf_loss(ps3, ns3, psamp3, tile_bytes=4096)
    jax.block_until_ready(out3)
    ref3 = _reference(ps3, ns3, psamp3)
    assert jnp.allclose(out3, ref3, rtol=1e-5, atol=1e-4), (out3, ref3)

    # --- test 4: aligned slab path with multiple tiles + ragged last tile ---
    ps4, ns4, psamp4, ss4, ssamp4 = _make_inputs(kC, 44, 64, 8)
    out4 = passleaf_loss(ps4, ns4, psamp4, semi_score=ss4, semi_sample=ssamp4,
                         num_neg=64, tile_bytes=4096)
    jax.block_until_ready(out4)
    ref4 = _reference(ps4, ns4, psamp4, semi_score=ss4, semi_sample=ssamp4, num_neg=64)
    assert jnp.allclose(out4, ref4, rtol=1e-5, atol=1e-4), (out4, ref4)

    print("KERNEL_OK")
</pallas_src>

<mosaic_0001>
module attributes {stable_mosaic.version = 11 : i64} {
  func.func @kernel(%arg0: i32, %arg1: i32, %arg2: memref<1x128xf32, #tpu.memory_space<vmem>>, %arg3: memref<1x128xf32, #tpu.memory_space<vmem>>, %arg4: memref<8x128xf32, #tpu.memory_space<vmem>>, %arg5: memref<8x128xf32, #tpu.memory_space<vmem>>, %arg6: memref<8x128xf32, #tpu.memory_space<vmem>>) attributes {dimension_semantics = [#tpu.dimension_semantics<arbitrary>, #tpu.dimension_semantics<arbitrary>], iteration_bounds = array<i64: 1, 1>, scalar_prefetch = 0 : i64, scratch_operands = 1 : i64, tpu.core_type = #tpu.core_type<tc>, window_params = [{pipeline_mode = #tpu.pipeline_mode<synchronous>, transform_indices = @transform_0, window_bounds = array<i64: 1, 128>}, {pipeline_mode = #tpu.pipeline_mode<synchronous>, transform_indices = @transform_1, window_bounds = array<i64: 1, 128>}, {transform_indices = @transform_2, window_bounds = array<i64: 8, 128>}, {transform_indices = @transform_3, window_bounds = array<i64: 8, 128>}]} {
    %c0_i32 = arith.constant 0 : i32
    %0 = arith.cmpi eq, %arg1, %c0_i32 : i32
    %1 = arith.extui %0 : i1 to i32
    %c0_i32_0 = arith.constant 0 : i32
    %2 = arith.cmpi ne, %1, %c0_i32_0 : i32
    scf.if %2 {
      %cst = arith.constant 0.000000e+00 : f32
      %16 = vector.broadcast %cst : f32 to vector<8x128xf32>
      %c0 = arith.constant 0 : index
      %c0_7 = arith.constant 0 : index
      %17 = vector.load %arg6[%c0, %c0_7] : memref<8x128xf32, #tpu.memory_space<vmem>>, vector<8x128xf32>
      tpu.vector_store %arg6[%c0, %c0_7], %16 {strides = array<i32>} : memref<8x128xf32, #tpu.memory_space<vmem>>, vector<8x128xf32>,
    } else {
    }
    %c1_i32 = arith.constant 1 : i32
    %3 = arith.muli %arg0, %c1_i32 : i32
    %4 = arith.addi %3, %arg1 : i32
    %c8_i32 = arith.constant 8 : i32
    %5 = arith.muli %4, %c8_i32 : i32
    %c8_i32_1 = arith.constant 8 : i32
    %6 = arith.addi %5, %c8_i32_1 : i32
    %c8_i32_2 = arith.constant 8 : i32
    %7 = arith.cmpi sle, %6, %c8_i32_2 : i32
    %8 = arith.extui %7 : i1 to i32
    %c0_i32_3 = arith.constant 0 : i32
    %9 = arith.cmpi ne, %8, %c0_i32_3 : i32
    scf.if %9 {
      %c0 = arith.constant 0 : index
      %c0_7 = arith.constant 0 : index
      %16 = vector.load %arg4[%c0, %c0_7] : memref<8x128xf32, #tpu.memory_space<vmem>>, vector<8x128xf32>
      %c0_8 = arith.constant 0 : index
      %c0_9 = arith.constant 0 : index
      %17 = vector.load %arg6[%c0_8, %c0_9] : memref<8x128xf32, #tpu.memory_space<vmem>>, vector<8x128xf32>
      %18 = arith.mulf %16, %16 : vector<8x128xf32>
      %19 = vector.shape_cast %18 : vector<8x128xf32> to vector<1x8x128xf32>
      %cst = arith.constant dense<0.000000e+00> : vector<8x128xf32>
      %20 = vector.multi_reduction <add>, %19, %cst [0] : vector<1x8x128xf32> to vector<8x128xf32>
      %21 = arith.addf %17, %20 : vector<8x128xf32>
      %c0_10 = arith.constant 0 : index
      %c0_11 = arith.constant 0 : index
      %22 = vector.load %arg6[%c0_10, %c0_11] : memref<8x128xf32, #tpu.memory_space<vmem>>, vector<8x128xf32>
      tpu.vector_store %arg6[%c0_10, %c0_11], %21 {strides = array<i32>} : memref<8x128xf32, #tpu.memory_space<vmem>>, vector<8x128xf32>,
    } else {
    }
    %true = arith.constant true
    %10 = arith.xori %7, %true : i1
    %11 = arith.extui %10 : i1 to i32
    %c0_i32_4 = arith.constant 0 : i32
    %12 = arith.cmpi ne, %11, %c0_i32_4 : i32
    scf.if %12 {
      %c0 = arith.constant 0 : index
      %c0_7 = arith.constant 0 : index
      %16 = vector.load %arg4[%c0, %c0_7] : memref<8x128xf32, #tpu.memory_space<vmem>>, vector<8x128xf32>
      %17 = arith.mulf %16, %16 : vector<8x128xf32>
      %18 = tpu.iota {dimensions = array<i32: 0>} : vector<8x128xi32>
      %19 = vector.broadcast %5 : i32 to vector<8x128xi32>
      %20 = arith.addi %19, %18 : vector<8x128xi32>
      %c8_i32_8 = arith.constant 8 : i32
      %21 = vector.broadcast %c8_i32_8 : i32 to vector<8x128xi32>
      %22 = arith.cmpi slt, %20, %21 : vector<8x128xi32>
      %cst = arith.constant 0.000000e+00 : f32
      %23 = vector.broadcast %cst : f32 to vector<8x128xf32>
      %24 = arith.select %22, %17, %23 : vector<8x128xi1>, vector<8x128xf32>
      %c0_9 = arith.constant 0 : index
      %c0_10 = arith.constant 0 : index
      %25 = vector.load %arg6[%c0_9, %c0_10] : memref<8x128xf32, #tpu.memory_space<vmem>>, vector<8x128xf32>
      %26 = vector.shape_cast %24 : vector<8x128xf32> to vector<1x8x128xf32>
      %cst_11 = arith.constant dense<0.000000e+00> : vector<8x128xf32>
      %27 = vector.multi_reduction <add>, %26, %cst_11 [0] : vector<1x8x128xf32> to vector<8x128xf32>
      %28 = arith.addf %25, %27 : vector<8x128xf32>
      %c0_12 = arith.constant 0 : index
      %c0_13 = arith.constant 0 : index
      %29 = vector.load %arg6[%c0_12, %c0_13] : memref<8x128xf32, #tpu.memory_space<vmem>>, vector<8x128xf32>
      tpu.vector_store %arg6[%c0_12, %c0_13], %28 {strides = array<i32>} : memref<8x128xf32, #tpu.memory_space<vmem>>, vector<8x128xf32>,
    } else {
    }
    %c0_i32_5 = arith.constant 0 : i32
    %13 = arith.cmpi eq, %arg1, %c0_i32_5 : i32
    %14 = arith.extui %13 : i1 to i32
    %c0_i32_6 = arith.constant 0 : i32
    %15 = arith.cmpi ne, %14, %c0_i32_6 : i32
    scf.if %15 {
      %c0 = arith.constant 0 : index
      %c0_7 = arith.constant 0 : index
      %16 = vector.load %arg6[%c0, %c0_7] : memref<8x128xf32, #tpu.memory_space<vmem>>, vector<8x128xf32>
      %17 = vector.shape_cast %16 : vector<8x128xf32> to vector<1x8x128xf32>
      %cst = arith.constant dense<0.000000e+00> : vector<1xf32>
      %18 = vector.multi_reduction <add>, %17, %cst [1, 2] : vector<1x8x128xf32> to vector<1xf32>
      %19 = vector.shape_cast %18 : vector<1xf32> to vector<1x1x1xf32>
      %20 = vector.extract %19[0, 0, 0] : f32 from vector<1x1x1xf32>
      %cst_8 = arith.constant 7.812500e-03 : f32
      %21 = arith.mulf %20, %cst_8 : f32
      %c0_9 = arith.constant 0 : index
      %c0_10 = arith.constant 0 : index
      %22 = vector.load %arg2[%c0_9, %c0_10] : memref<1x128xf32, #tpu.memory_space<vmem>>, vector<1x128xf32>
      %c0_11 = arith.constant 0 : index
      %c0_12 = arith.constant 0 : index
      %23 = vector.load %arg3[%c0_11, %c0_12] : memref<1x128xf32, #tpu.memory_space<vmem>>, vector<1x128xf32>
      %24 = arith.subf %22, %23 : vector<1x128xf32>
      %25 = arith.mulf %24, %24 : vector<1x128xf32>
      %26 = vector.shape_cast %25 : vector<1x128xf32> to vector<1x1x128xf32>
      %cst_13 = arith.constant dense<0.000000e+00> : vector<1xf32>
      %27 = vector.multi_reduction <add>, %26, %cst_13 [1, 2] : vector<1x1x128xf32> to vector<1xf32>
      %28 = vector.shape_cast %27 : vector<1xf32> to vector<1x1x1xf32>
      %29 = vector.extract %28[0, 0, 0] : f32 from vector<1x1x1xf32>
      %30 = arith.addf %21, %29 : f32
      %31 = vector.broadcast %30 : f32 to vector<8x128xf32>
      %c0_14 = arith.constant 0 : index
      %c0_15 = arith.constant 0 : index
      %32 = vector.load %arg5[%c0_14, %c0_15] : memref<8x128xf32, #tpu.memory_space<vmem>>, vector<8x128xf32>
      tpu.vector_store %arg5[%c0_14, %c0_15], %31 {strides = array<i32>} : memref<8x128xf32, #tpu.memory_space<vmem>>, vector<8x128xf32>,
    } else {
    }
    return
  }
  func.func @transform_0(%arg0: i32, %arg1: i32) -> (i32, i32) {
    %c0_i32 = arith.constant 0 : i32
    %c0_i32_0 = arith.constant 0 : i32
    %c0_i32_1 = arith.constant 0 : i32
    return %c0_i32, %c0_i32_0 : i32, i32
  }
  func.func @transform_1(%arg0: i32, %arg1: i32) -> (i32, i32) {
    %c0_i32 = arith.constant 0 : i32
    %c0_i32_0 = arith.constant 0 : i32
    %c0_i32_1 = arith.constant 0 : i32
    return %c0_i32, %c0_i32_0 : i32, i32
  }
  func.func @transform_2(%arg0: i32, %arg1: i32) -> (i32, i32) {
    %c1_i32 = arith.constant 1 : i32
    %0 = arith.muli %arg0, %c1_i32 : i32
    %1 = arith.addi %0, %arg1 : i32
    %c0_i32 = arith.constant 0 : i32
    %2 = arith.minsi %1, %c0_i32 : i32
    %c0_i32_0 = arith.constant 0 : i32
    %c0_i32_1 = arith.constant 0 : i32
    return %2, %c0_i32_0 : i32, i32
  }
  func.func @transform_3(%arg0: i32, %arg1: i32) -> (i32, i32) {
    %c0_i32 = arith.constant 0 : i32
    %c0_i32_0 = arith.constant 0 : i32
    return %arg0, %c0_i32 : i32, i32
  }
}

</mosaic_0001>

<llo_original>
// kernel: tpu_custom_call.1
$region0: #{tpu_custom_call.1}
  #allocation0 [shape = 'u32[]', space=smem, size = 0x4, offset = 0x4, fixed_abs, tag = 'smem constant byte address 0x4 - core index']
  #allocation1 [shape = 'u32[144,128]{1,0:T(1,128)}', space=vmem, size = 0x12000, scoped, tag = 'internal scratch']
  #allocation2 [shape = 'f32[8,128]{1,0:T(8,128)}', space=vmem, size = 0x1000, scoped, tag = 'scratch operand']
  %s0 = inlined_call_operand.hbm [shape: f32[1,128], index: 0, kind: input, shape index: {}]
  %s1 = inlined_call_operand.vmem [shape: f32[1,128], index: 1, kind: input, shape index: {}]
  %s2 = inlined_call_operand.hbm [shape: f32[8,128], index: 2, kind: input, shape index: {}]
  %s3 = inlined_call_operand.hbm [shape: f32[8,128], index: 3, kind: output, shape index: {}]
  %s4 = sld [smem:[#allocation0]]
  $region46: #{tpu_custom_call.1} parent=0
    _
  %s6 = ssub.s32 1, %s4
  %s7 = scalar_select 0, %s6, %s4
  $region1: #{tpu_custom_call.1} parent=0
    #allocation3 [shape = 'u8[512]{0}', space=vmem, size = 0x400, scoped, tag = 'input window, operand 0, single buffered']
    #allocation4 [shape = 's32[1]{0}', space=sflag, size = 0x4, scoped, tag = 'scoped memory for tpu_custom_call.1']
    #allocation5 [shape = 's32[1]{0}', space=sflag, size = 0x4, scoped, tag = 'scoped memory for tpu_custom_call.1']
    #allocation6 [shape = 'u8[4096]{0}', space=vmem, size = 0x1000, scoped, tag = 'input window, operand 2, single buffered']
    #allocation7 [shape = 's32[1]{0}', space=sflag, size = 0x4, scoped, tag = 'scoped memory for tpu_custom_call.1']
    #allocation8 [shape = 'u8[4096]{0}', space=vmem, size = 0x1000, scoped, tag = 'output window, operand 0, single buffered']
    %8 = vsyncpa [#allocation4], 0
    %9 = vsyncpa [#allocation7], 0
    %10 = vsyncpa [#allocation5], 0
    // Predicated region
    $region2: #{tpu_custom_call.1} parent=1 // pred_check
      _
    $region3: #{tpu_custom_call.1} parent=1 // pred_check_branch
      %12 = sbr.rel (0) target = $region5
    $region4: #{tpu_custom_call.1} parent=1 // pred_region
      %s14 = ssub.s32 16, 16
      %15 = vsyncadd [#allocation4], %s14
      %s17 = sshll.u32 [#allocation3], 4
      %s18 = int_to_ptr.vmem [resolvable:$true] %s17
      %20 = dma.hbm_to_vmem [thread:$0]  %s0, 16, %s18, [#allocation4]
    $region5: #{tpu_custom_call.1} parent=1 // pred_fallthru
      _
    // Predicated region
    $region6: #{tpu_custom_call.1} parent=1 // pred_check
      _
    $region7: #{tpu_custom_call.1} parent=1 // pred_check_branch
      %22 = sbr.rel (0) target = $region9
    $region8: #{tpu_custom_call.1} parent=1 // pred_region
      _
    $region9: #{tpu_custom_call.1} parent=1 // pred_fallthru
      _
    // Predicated region
    $region10: #{tpu_custom_call.1} parent=1 // pred_check
      _
    $region11: #{tpu_custom_call.1} parent=1 // pred_check_branch
      %24 = sbr.rel (0) target = $region13
    $region12: #{tpu_custom_call.1} parent=1 // pred_region
      %s25 = sadd.s32 0, 0
      %p26 = scmp.lt.s32.totalorder %s25, 0
      %s27 = scalar_select %p26, %s25, 0
      %s29 = ssub.s32 128, 128
      %30 = vsyncadd [#allocation7], %s29
      %s31 = smul.addr %s27, 128
      %s32 = scalar_lea.hbm %s2, %s31
      %s34 = sshll.u32 [#allocation6], 4
      %s35 = int_to_ptr.vmem [resolvable:$true] %s34
      %37 = dma.hbm_to_vmem [thread:$0]  %s32, 128, %s35, [#allocation7]
    $region13: #{tpu_custom_call.1} parent=1 // pred_fallthru
      _
    // Predicated region
    $region14: #{tpu_custom_call.1} parent=1 // pred_check
      _
    $region15: #{tpu_custom_call.1} parent=1 // pred_check_branch
      %39 = sbr.rel (0) target = $region17
    $region16: #{tpu_custom_call.1} parent=1 // pred_region
      %40 = dma.done [#allocation4], 16
    $region17: #{tpu_custom_call.1} parent=1 // pred_fallthru
      _
    // Predicated region
    $region18: #{tpu_custom_call.1} parent=1 // pred_check
      _
    $region19: #{tpu_custom_call.1} parent=1 // pred_check_branch
      %42 = sbr.rel (0) target = $region21
    $region20: #{tpu_custom_call.1} parent=1 // pred_region
      %43 = dma.done [#allocation7], 128
    $region21: #{tpu_custom_call.1} parent=1 // pred_fallthru
      _
    %s44 = sadd.s32 0, 0
    %p45 = scmp.lt.s32.totalorder %s44, 0
    %s46 = scalar_select %p45, %s44, 0
    %p47 = scmp.eq.s32.totalorder 0, 0
    // Predicated region
    $region22: #{tpu_custom_call.1} parent=1 // pred_check
      %p48 = pneg %p47
    $region23: #{tpu_custom_call.1} parent=1 // pred_check_branch
      %50 = sbr.rel (%p48) target = $region25
    $region24: #{tpu_custom_call.1} parent=1 // pred_region
      %51 = vst [vmem:[#allocation2] sm:$0xff] 0.0
    $region25: #{tpu_custom_call.1} parent=1 // pred_fallthru
      _
    %s52 = sadd.s32 0, 0
    %s53 = smul.u32 %s52, 8
    %s54 = sadd.s32 %s53, 8
    %p55 = scmp.le.s32.totalorder %s54, 8
    // Predicated region
    $region26: #{tpu_custom_call.1} parent=1 // pred_check
      %p56 = pneg %p55
    $region27: #{tpu_custom_call.1} parent=1 // pred_check_branch
      %58 = sbr.rel (%p56) target = $region29
    $region28: #{tpu_custom_call.1} parent=1 // pred_region
      %v59 = vld [vmem:[#allocation6] sm:$0xff]
      %v60 = vld [vmem:[#allocation2] sm:$0xff]
      %v61 = vmul.f32 %v59, %v59
      %v62 = vadd.f32 %v61, 0.0
      %v63 = vadd.f32 %v60, %v62
      %64 = vst [vmem:[#allocation2] sm:$0xff] %v63
    $region29: #{tpu_custom_call.1} parent=1 // pred_fallthru
      _
    %p65 = scmp.gt.s32.totalorder %s54, 8
    // Predicated region
    $region30: #{tpu_custom_call.1} parent=1 // pred_check
      %p66 = pneg %p65
    $region31: #{tpu_custom_call.1} parent=1 // pred_check_branch
      %68 = sbr.rel (%p66) target = $region33
    $region32: #{tpu_custom_call.1} parent=1 // pred_region
      %v69 = vld [vmem:[#allocation6] sm:$0xff]
      %v70 = vmul.f32 %v69, %v69
      %v71 = vlaneseq
      %v72 = vshrl.u32 %v71, 7
      %v73 = vstv %s53
      %v74 = vadd.s32 %v73, %v72
      %vm75 = vcmp.lt.s32.totalorder %v74, 8
      %v76 = vsel %vm75, %v70, 0.0
      %v77 = vld [vmem:[#allocation2] sm:$0xff]
      %v78 = vadd.f32 %v76, 0.0
      %v79 = vadd.f32 %v77, %v78
      %80 = vst [vmem:[#allocation2] sm:$0xff] %v79
    $region33: #{tpu_custom_call.1} parent=1 // pred_fallthru
      _
    // Predicated region
    $region34: #{tpu_custom_call.1} parent=1 // pred_check
      %p81 = pneg %p47
    $region35: #{tpu_custom_call.1} parent=1 // pred_check_branch
      %83 = sbr.rel (%p81) target = $region37
    $region36: #{tpu_custom_call.1} parent=1 // pred_region
      %v84 = vld [vmem:[#allocation2] sm:$0xff]
      %85 = vadd.xlane.f32.xlu0 %v84
      %v86 = vpop.xlane.xlu0 %85
      %v87 = vrot.slane %v86, 4
      %v88 = vadd.f32 %v86, %v87
      %v89 = vrot.slane %v88, 2
      %v90 = vadd.f32 %v88, %v89
      %v91 = vrot.slane %v90, 1
      %v92 = vadd.f32 %v90, %v91
      %s93 = vtos %v92
      %s94 = smul.f32 %s93, 0.0078125
      %v95 = vld [vmem:[#allocation3] sm:$0x1]
      %v96 = vld [vmem:[%s1] sm:$0x1]
      %v97 = vsub.f32 %v95, %v96
      %v98 = vmul.f32 %v97, %v97
      %vm99 = vcmask 1040384
      %v100 = vsel %vm99, %v98, 0.0
      %101 = vadd.xlane.f32.xlu0 %v100
      %v102 = vpop.xlane.xlu0 %101
      %v103 = vrot.slane %v102, 4
      %v104 = vadd.f32 %v102, %v103
      %v105 = vrot.slane %v104, 2
      %v106 = vadd.f32 %v104, %v105
      %v107 = vrot.slane %v106, 1
      %v108 = vadd.f32 %v106, %v107
      %s109 = vtos %v108
      %s110 = sadd.f32 %s94, %s109
      %v111 = vstv %s110
      %112 = vst [vmem:[#allocation8] sm:$0xff] %v111
    $region37: #{tpu_custom_call.1} parent=1 // pred_fallthru
      _
    // Predicated region
    $region38: #{tpu_custom_call.1} parent=1 // pred_check
      _
    $region39: #{tpu_custom_call.1} parent=1 // pred_check_branch
      %114 = sbr.rel (0) target = $region41
    $region40: #{tpu_custom_call.1} parent=1 // pred_region
      %s116 = ssub.s32 128, 128
      %117 = vsyncadd [#allocation5], %s116
      %s119 = sshll.u32 [#allocation8], 4
      %s120 = int_to_ptr.vmem [resolvable:$true] %s119
      %122 = dma.vmem_to_hbm [thread:$0]  %s120, 128, %s3, [#allocation5]
    $region41: #{tpu_custom_call.1} parent=1 // pred_fallthru
      _
    // Predicated region
    $region42: #{tpu_custom_call.1} parent=1 // pred_check
      _
    $region43: #{tpu_custom_call.1} parent=1 // pred_check_branch
      %124 = sbr.rel (0) target = $region45
    $region44: #{tpu_custom_call.1} parent=1 // pred_region
      %125 = dma.done [#allocation5], 128
    $region45: #{tpu_custom_call.1} parent=1 // pred_fallthru
      _
    %126 = vsyncpa [#allocation4], 1
    %127 = vsyncpa [#allocation7], 1
    %128 = vsyncpa [#allocation5], 1

</llo_original>
